<compile_context>
chip_gen: v7x
topology: tpu7x:2x2x1
jax: 0.10.0
libtpu: 0.0.40
codegen_flags: <defaults>
</compile_context>

<pallas_src>
import math
import numpy as np

import jax
import jax.numpy as jnp
from jax.experimental import pallas as pl
from jax.experimental.pallas import tpu as pltpu


def get_degree_operator(m: int) -> np.ndarray:
    """Dense (m, L) degree operator: D[a, e] = 1 if node a is an endpoint of
    edge e, with edges (i, j), i<j, in row-major upper-triangular order."""
    L = m * (m - 1) // 2
    D = np.zeros((m, L), dtype=np.float32)
    e = 0
    for i in range(m):
        for j in range(i + 1, m):
            D[i, e] = 1.0
            D[j, e] = 1.0
            e += 1
    return D


def _build_fused_operator(D: np.ndarray, gn: float, beta: float) -> np.ndarray:
    """(L+m, L+m) operator A such that for s = [w | v]:
         s @ A = [ (1-2*gn*beta)*w - gn*(v@D)  |  gn*(w@D.T) + v ]."""
    m, L = D.shape
    c1 = 1.0 - 2.0 * gn * beta
    A = np.zeros((L + m, L + m), dtype=np.float32)
    A[:L, :L] = c1 * np.eye(L, dtype=np.float32)
    A[:L, L:] = gn * D.T
    A[L:, :L] = -gn * D
    A[L:, L:] = np.eye(m, dtype=np.float32)
    return A


def recurrent_unrolling_pallas(z, D, num_unroll, gn=0.01, alpha=1.0, beta=1.0):
    z = jnp.asarray(z, jnp.float32)
    B, L = z.shape
    D_np = np.asarray(D, dtype=np.float32)
    m = D_np.shape[0]
    Lm = L + m

    gn = float(gn)
    alpha = float(alpha)
    beta = float(beta)
    two_gn = 2.0 * gn
    four_gn_alpha = 4.0 * gn * alpha

    A = jnp.asarray(_build_fused_operator(D_np, gn, beta))          # (Lm, Lm)
    # z embedded in the fused-state lane layout: [z | 0_m]. The lane mask
    # selects which prox is applied, so the padded lanes never matter.
    z_ext = jnp.concatenate([z, jnp.zeros((B, m), jnp.float32)], axis=1)

    def kernel(z_ref, a_ref, o_ref):
        Aop = a_ref[...]                                      # (Lm, Lm)
        z2 = two_gn * z_ref[...]                              # hoisted, loop-invariant
        col = jax.lax.broadcasted_iota(jnp.int32, (B, Lm), 1)
        is_edge_lane = col < L                                # w lanes vs v lanes

        s = jnp.zeros((B, Lm), jnp.float32)                   # [w | v] = 0
        outs = []
        for _ in range(num_unroll):                           # static unroll
            # y = [y1 | y2] in one MXU matmul
            y = jnp.dot(s, Aop, preferred_element_type=jnp.float32)
            # p1 = max(0, y1 - 2*gn*z)       (edge lanes)
            cand_w = jnp.maximum(0.0, y - z2)
            # p2 = (y2 - sqrt(clamp(y2^2 + 4*gn*alpha, 1e-8))) / 2   (node lanes)
            up = jnp.maximum(y * y + four_gn_alpha, 1e-8)
            cand_v = 0.5 * (y - jnp.sqrt(up))
            p = jnp.where(is_edge_lane, cand_w, cand_v)
            # q = [q1 | q2] in one MXU matmul (same operator)
            q = jnp.dot(p, Aop, preferred_element_type=jnp.float32)
            s = s - y + q
            outs.append(s[:, :L])                             # w of this layer
        # single lane-dense store: (B, num_unroll*L)
        o_ref[...] = jnp.concatenate(outs, axis=1)

    out = pl.pallas_call(
        kernel,
        out_shape=jax.ShapeDtypeStruct((B, num_unroll * L), jnp.float32),
        grid=(1,),
        in_specs=[
            pl.BlockSpec((B, Lm), lambda i: (0, 0)),          # [z | 0]
            pl.BlockSpec((Lm, Lm), lambda i: (0, 0)),         # fused operator A
        ],
        out_specs=pl.BlockSpec((B, num_unroll * L), lambda i: (0, 0)),
        compiler_params=pltpu.CompilerParams(
            dimension_semantics=("arbitrary",)),
    )(z_ext, A)

    # (B, num_unroll*L) -> (B, num_unroll, L): contiguous split, no data copy.
    return out.reshape(B, num_unroll, L)


def recurrent_unrolling_ref(z, D, num_unroll, gn=0.01, alpha=1.0, beta=1.0):
    """Pure-JAX reference mirroring the PyTorch forward."""
    B, L = z.shape
    m = D.shape[0]
    w = jnp.zeros((B, L), jnp.float32)
    v = jnp.zeros((B, m), jnp.float32)
    outs = []
    for _ in range(num_unroll):
        y1 = w - gn * (2.0 * beta * w + v @ D)
        y2 = v + gn * (w @ D.T)
        p1 = jnp.maximum(0.0, y1 - 2.0 * gn * z)
        up = jnp.maximum(y2 ** 2 + 4.0 * gn * alpha, 1e-8)
        p2 = (y2 - jnp.sqrt(up)) / 2.0
        q1 = p1 - gn * (2.0 * beta * p1 + p2 @ D)
        q2 = p2 + gn * (p1 @ D.T)
        w = w - y1 + q1
        v = v - y2 + q2
        outs.append(w)
    return jnp.stack(outs, axis=1)


if __name__ == "__main__":
    # Small synthetic problem: m = 8 nodes -> L = 28 edge weights.
    m = 8
    L = m * (m - 1) // 2
    B = 4
    NUM_UNROLL = 6

    # Deterministic "parameters" from __init__ (learnable scalars in torch).
    GN, ALPHA, BETA = 0.01, 1.0, 1.0

    key = jax.random.PRNGKey(0)
    z = jax.random.normal(key, (B, L), dtype=jnp.float32)
    D = jnp.asarray(get_degree_operator(m))

    w_list = recurrent_unrolling_pallas(z, D, NUM_UNROLL, GN, ALPHA, BETA)
    w_list = jax.block_until_ready(w_list)

    w_ref = recurrent_unrolling_ref(z, D, NUM_UNROLL, GN, ALPHA, BETA)
    assert w_list.shape == (B, NUM_UNROLL, L), w_list.shape
    np.testing.assert_allclose(np.asarray(w_list), np.asarray(w_ref),
                               rtol=1e-3, atol=1e-5)

    print("KERNEL_OK")
</pallas_src>

<mosaic_0001>
module attributes {stable_mosaic.version = 11 : i64} {
  func.func @kernel(%arg0: i32, %arg1: memref<4x36xf32, #tpu.memory_space<vmem>>, %arg2: memref<36x36xf32, #tpu.memory_space<vmem>>, %arg3: memref<4x168xf32, #tpu.memory_space<vmem>>) attributes {dimension_semantics = [#tpu.dimension_semantics<arbitrary>], iteration_bounds = array<i64: 1>, scalar_prefetch = 0 : i64, scratch_operands = 0 : i64, tpu.core_type = #tpu.core_type<tc>, window_params = [{pipeline_mode = #tpu.pipeline_mode<synchronous>, transform_indices = @transform_0, window_bounds = array<i64: 4, 36>}, {pipeline_mode = #tpu.pipeline_mode<synchronous>, transform_indices = @transform_1, window_bounds = array<i64: 36, 36>}, {pipeline_mode = #tpu.pipeline_mode<synchronous>, transform_indices = @transform_2, window_bounds = array<i64: 4, 168>}]} {
    %c0 = arith.constant 0 : index
    %c0_0 = arith.constant 0 : index
    %0 = vector.load %arg2[%c0, %c0_0] : memref<36x36xf32, #tpu.memory_space<vmem>>, vector<36x36xf32>
    %c0_1 = arith.constant 0 : index
    %c0_2 = arith.constant 0 : index
    %1 = vector.load %arg1[%c0_1, %c0_2] : memref<4x36xf32, #tpu.memory_space<vmem>>, vector<4x36xf32>
    %cst = arith.constant 2.000000e-02 : f32
    %2 = vector.broadcast %cst : f32 to vector<4x36xf32>
    %3 = arith.mulf %2, %1 : vector<4x36xf32>
    %4 = tpu.iota {dimensions = array<i32: 1>} : vector<4x36xi32>
    %c28_i32 = arith.constant 28 : i32
    %5 = vector.broadcast %c28_i32 : i32 to vector<4x36xi32>
    %6 = arith.cmpi slt, %4, %5 : vector<4x36xi32>
    %cst_3 = arith.constant 0.000000e+00 : f32
    %7 = vector.broadcast %cst_3 : f32 to vector<4x36xf32>
    %cst_4 = arith.constant dense<0.000000e+00> : vector<4x36xf32>
    %8 = tpu.matmul %7, %0, %cst_4 {dimension_numbers = #tpu.dot_dimension_numbers<[1], [0], [0], [1], [0, 0, 1, 1], [], []>} : vector<4x36xf32>, vector<36x36xf32>, vector<4x36xf32> -> vector<4x36xf32>
    %9 = arith.subf %8, %3 : vector<4x36xf32>
    %cst_5 = arith.constant 0.000000e+00 : f32
    %10 = vector.broadcast %cst_5 : f32 to vector<4x36xf32>
    %11 = arith.maximumf %10, %9 : vector<4x36xf32>
    %12 = arith.mulf %8, %8 : vector<4x36xf32>
    %cst_6 = arith.constant 4.000000e-02 : f32
    %13 = vector.broadcast %cst_6 : f32 to vector<4x36xf32>
    %14 = arith.addf %12, %13 : vector<4x36xf32>
    %cst_7 = arith.constant 9.99999993E-9 : f32
    %15 = vector.broadcast %cst_7 : f32 to vector<4x36xf32>
    %16 = arith.maximumf %14, %15 : vector<4x36xf32>
    %17 = math.sqrt %16 : vector<4x36xf32>
    %18 = arith.subf %8, %17 : vector<4x36xf32>
    %cst_8 = arith.constant 5.000000e-01 : f32
    %19 = vector.broadcast %cst_8 : f32 to vector<4x36xf32>
    %20 = arith.mulf %19, %18 : vector<4x36xf32>
    %21 = arith.select %6, %11, %20 : vector<4x36xi1>, vector<4x36xf32>
    %cst_9 = arith.constant dense<0.000000e+00> : vector<4x36xf32>
    %22 = tpu.matmul %21, %0, %cst_9 {dimension_numbers = #tpu.dot_dimension_numbers<[1], [0], [0], [1], [0, 0, 1, 1], [], []>} : vector<4x36xf32>, vector<36x36xf32>, vector<4x36xf32> -> vector<4x36xf32>
    %23 = arith.subf %7, %8 : vector<4x36xf32>
    %24 = arith.addf %23, %22 : vector<4x36xf32>
    %25 = vector.extract_strided_slice %24 {offsets = [0, 0], sizes = [4, 28], strides = [1, 1]} : vector<4x36xf32> to vector<4x28xf32>
    %cst_10 = arith.constant dense<0.000000e+00> : vector<4x36xf32>
    %26 = tpu.matmul %24, %0, %cst_10 {dimension_numbers = #tpu.dot_dimension_numbers<[1], [0], [0], [1], [0, 0, 1, 1], [], []>} : vector<4x36xf32>, vector<36x36xf32>, vector<4x36xf32> -> vector<4x36xf32>
    %27 = arith.subf %26, %3 : vector<4x36xf32>
    %cst_11 = arith.constant 0.000000e+00 : f32
    %28 = vector.broadcast %cst_11 : f32 to vector<4x36xf32>
    %29 = arith.maximumf %28, %27 : vector<4x36xf32>
    %30 = arith.mulf %26, %26 : vector<4x36xf32>
    %cst_12 = arith.constant 4.000000e-02 : f32
    %31 = vector.broadcast %cst_12 : f32 to vector<4x36xf32>
    %32 = arith.addf %30, %31 : vector<4x36xf32>
    %cst_13 = arith.constant 9.99999993E-9 : f32
    %33 = vector.broadcast %cst_13 : f32 to vector<4x36xf32>
    %34 = arith.maximumf %32, %33 : vector<4x36xf32>
    %35 = math.sqrt %34 : vector<4x36xf32>
    %36 = arith.subf %26, %35 : vector<4x36xf32>
    %cst_14 = arith.constant 5.000000e-01 : f32
    %37 = vector.broadcast %cst_14 : f32 to vector<4x36xf32>
    %38 = arith.mulf %37, %36 : vector<4x36xf32>
    %39 = arith.select %6, %29, %38 : vector<4x36xi1>, vector<4x36xf32>
    %cst_15 = arith.constant dense<0.000000e+00> : vector<4x36xf32>
    %40 = tpu.matmul %39, %0, %cst_15 {dimension_numbers = #tpu.dot_dimension_numbers<[1], [0], [0], [1], [0, 0, 1, 1], [], []>} : vector<4x36xf32>, vector<36x36xf32>, vector<4x36xf32> -> vector<4x36xf32>
    %41 = arith.subf %24, %26 : vector<4x36xf32>
    %42 = arith.addf %41, %40 : vector<4x36xf32>
    %43 = vector.extract_strided_slice %42 {offsets = [0, 0], sizes = [4, 28], strides = [1, 1]} : vector<4x36xf32> to vector<4x28xf32>
    %cst_16 = arith.constant dense<0.000000e+00> : vector<4x36xf32>
    %44 = tpu.matmul %42, %0, %cst_16 {dimension_numbers = #tpu.dot_dimension_numbers<[1], [0], [0], [1], [0, 0, 1, 1], [], []>} : vector<4x36xf32>, vector<36x36xf32>, vector<4x36xf32> -> vector<4x36xf32>
    %45 = arith.subf %44, %3 : vector<4x36xf32>
    %cst_17 = arith.constant 0.000000e+00 : f32
    %46 = vector.broadcast %cst_17 : f32 to vector<4x36xf32>
    %47 = arith.maximumf %46, %45 : vector<4x36xf32>
    %48 = arith.mulf %44, %44 : vector<4x36xf32>
    %cst_18 = arith.constant 4.000000e-02 : f32
    %49 = vector.broadcast %cst_18 : f32 to vector<4x36xf32>
    %50 = arith.addf %48, %49 : vector<4x36xf32>
    %cst_19 = arith.constant 9.99999993E-9 : f32
    %51 = vector.broadcast %cst_19 : f32 to vector<4x36xf32>
    %52 = arith.maximumf %50, %51 : vector<4x36xf32>
    %53 = math.sqrt %52 : vector<4x36xf32>
    %54 = arith.subf %44, %53 : vector<4x36xf32>
    %cst_20 = arith.constant 5.000000e-01 : f32
    %55 = vector.broadcast %cst_20 : f32 to vector<4x36xf32>
    %56 = arith.mulf %55, %54 : vector<4x36xf32>
    %57 = arith.select %6, %47, %56 : vector<4x36xi1>, vector<4x36xf32>
    %cst_21 = arith.constant dense<0.000000e+00> : vector<4x36xf32>
    %58 = tpu.matmul %57, %0, %cst_21 {dimension_numbers = #tpu.dot_dimension_numbers<[1], [0], [0], [1], [0, 0, 1, 1], [], []>} : vector<4x36xf32>, vector<36x36xf32>, vector<4x36xf32> -> vector<4x36xf32>
    %59 = arith.subf %42, %44 : vector<4x36xf32>
    %60 = arith.addf %59, %58 : vector<4x36xf32>
    %61 = vector.extract_strided_slice %60 {offsets = [0, 0], sizes = [4, 28], strides = [1, 1]} : vector<4x36xf32> to vector<4x28xf32>
    %cst_22 = arith.constant dense<0.000000e+00> : vector<4x36xf32>
    %62 = tpu.matmul %60, %0, %cst_22 {dimension_numbers = #tpu.dot_dimension_numbers<[1], [0], [0], [1], [0, 0, 1, 1], [], []>} : vector<4x36xf32>, vector<36x36xf32>, vector<4x36xf32> -> vector<4x36xf32>
    %63 = arith.subf %62, %3 : vector<4x36xf32>
    %cst_23 = arith.constant 0.000000e+00 : f32
    %64 = vector.broadcast %cst_23 : f32 to vector<4x36xf32>
    %65 = arith.maximumf %64, %63 : vector<4x36xf32>
    %66 = arith.mulf %62, %62 : vector<4x36xf32>
    %cst_24 = arith.constant 4.000000e-02 : f32
    %67 = vector.broadcast %cst_24 : f32 to vector<4x36xf32>
    %68 = arith.addf %66, %67 : vector<4x36xf32>
    %cst_25 = arith.constant 9.99999993E-9 : f32
    %69 = vector.broadcast %cst_25 : f32 to vector<4x36xf32>
    %70 = arith.maximumf %68, %69 : vector<4x36xf32>
    %71 = math.sqrt %70 : vector<4x36xf32>
    %72 = arith.subf %62, %71 : vector<4x36xf32>
    %cst_26 = arith.constant 5.000000e-01 : f32
    %73 = vector.broadcast %cst_26 : f32 to vector<4x36xf32>
    %74 = arith.mulf %73, %72 : vector<4x36xf32>
    %75 = arith.select %6, %65, %74 : vector<4x36xi1>, vector<4x36xf32>
    %cst_27 = arith.constant dense<0.000000e+00> : vector<4x36xf32>
    %76 = tpu.matmul %75, %0, %cst_27 {dimension_numbers = #tpu.dot_dimension_numbers<[1], [0], [0], [1], [0, 0, 1, 1], [], []>} : vector<4x36xf32>, vector<36x36xf32>, vector<4x36xf32> -> vector<4x36xf32>
    %77 = arith.subf %60, %62 : vector<4x36xf32>
    %78 = arith.addf %77, %76 : vector<4x36xf32>
    %79 = vector.extract_strided_slice %78 {offsets = [0, 0], sizes = [4, 28], strides = [1, 1]} : vector<4x36xf32> to vector<4x28xf32>
    %cst_28 = arith.constant dense<0.000000e+00> : vector<4x36xf32>
    %80 = tpu.matmul %78, %0, %cst_28 {dimension_numbers = #tpu.dot_dimension_numbers<[1], [0], [0], [1], [0, 0, 1, 1], [], []>} : vector<4x36xf32>, vector<36x36xf32>, vector<4x36xf32> -> vector<4x36xf32>
    %81 = arith.subf %80, %3 : vector<4x36xf32>
    %cst_29 = arith.constant 0.000000e+00 : f32
    %82 = vector.broadcast %cst_29 : f32 to vector<4x36xf32>
    %83 = arith.maximumf %82, %81 : vector<4x36xf32>
    %84 = arith.mulf %80, %80 : vector<4x36xf32>
    %cst_30 = arith.constant 4.000000e-02 : f32
    %85 = vector.broadcast %cst_30 : f32 to vector<4x36xf32>
    %86 = arith.addf %84, %85 : vector<4x36xf32>
    %cst_31 = arith.constant 9.99999993E-9 : f32
    %87 = vector.broadcast %cst_31 : f32 to vector<4x36xf32>
    %88 = arith.maximumf %86, %87 : vector<4x36xf32>
    %89 = math.sqrt %88 : vector<4x36xf32>
    %90 = arith.subf %80, %89 : vector<4x36xf32>
    %cst_32 = arith.constant 5.000000e-01 : f32
    %91 = vector.broadcast %cst_32 : f32 to vector<4x36xf32>
    %92 = arith.mulf %91, %90 : vector<4x36xf32>
    %93 = arith.select %6, %83, %92 : vector<4x36xi1>, vector<4x36xf32>
    %cst_33 = arith.constant dense<0.000000e+00> : vector<4x36xf32>
    %94 = tpu.matmul %93, %0, %cst_33 {dimension_numbers = #tpu.dot_dimension_numbers<[1], [0], [0], [1], [0, 0, 1, 1], [], []>} : vector<4x36xf32>, vector<36x36xf32>, vector<4x36xf32> -> vector<4x36xf32>
    %95 = arith.subf %78, %80 : vector<4x36xf32>
    %96 = arith.addf %95, %94 : vector<4x36xf32>
    %97 = vector.extract_strided_slice %96 {offsets = [0, 0], sizes = [4, 28], strides = [1, 1]} : vector<4x36xf32> to vector<4x28xf32>
    %cst_34 = arith.constant dense<0.000000e+00> : vector<4x36xf32>
    %98 = tpu.matmul %96, %0, %cst_34 {dimension_numbers = #tpu.dot_dimension_numbers<[1], [0], [0], [1], [0, 0, 1, 1], [], []>} : vector<4x36xf32>, vector<36x36xf32>, vector<4x36xf32> -> vector<4x36xf32>
    %99 = arith.subf %98, %3 : vector<4x36xf32>
    %cst_35 = arith.constant 0.000000e+00 : f32
    %100 = vector.broadcast %cst_35 : f32 to vector<4x36xf32>
    %101 = arith.maximumf %100, %99 : vector<4x36xf32>
    %102 = arith.mulf %98, %98 : vector<4x36xf32>
    %cst_36 = arith.constant 4.000000e-02 : f32
    %103 = vector.broadcast %cst_36 : f32 to vector<4x36xf32>
    %104 = arith.addf %102, %103 : vector<4x36xf32>
    %cst_37 = arith.constant 9.99999993E-9 : f32
    %105 = vector.broadcast %cst_37 : f32 to vector<4x36xf32>
    %106 = arith.maximumf %104, %105 : vector<4x36xf32>
    %107 = math.sqrt %106 : vector<4x36xf32>
    %108 = arith.subf %98, %107 : vector<4x36xf32>
    %cst_38 = arith.constant 5.000000e-01 : f32
    %109 = vector.broadcast %cst_38 : f32 to vector<4x36xf32>
    %110 = arith.mulf %109, %108 : vector<4x36xf32>
    %111 = arith.select %6, %101, %110 : vector<4x36xi1>, vector<4x36xf32>
    %cst_39 = arith.constant dense<0.000000e+00> : vector<4x36xf32>
    %112 = tpu.matmul %111, %0, %cst_39 {dimension_numbers = #tpu.dot_dimension_numbers<[1], [0], [0], [1], [0, 0, 1, 1], [], []>} : vector<4x36xf32>, vector<36x36xf32>, vector<4x36xf32> -> vector<4x36xf32>
    %113 = arith.subf %96, %98 : vector<4x36xf32>
    %114 = arith.addf %113, %112 : vector<4x36xf32>
    %115 = vector.extract_strided_slice %114 {offsets = [0, 0], sizes = [4, 28], strides = [1, 1]} : vector<4x36xf32> to vector<4x28xf32>
    %116 = tpu.concatenate %25, %43, %61, %79, %97, %115 in 1 : vector<4x28xf32>, vector<4x28xf32>, vector<4x28xf32>, vector<4x28xf32>, vector<4x28xf32>, vector<4x28xf32> -> vector<4x168xf32>
    %c0_40 = arith.constant 0 : index
    %c0_41 = arith.constant 0 : index
    %117 = vector.load %arg3[%c0_40, %c0_41] : memref<4x168xf32, #tpu.memory_space<vmem>>, vector<4x168xf32>
    tpu.vector_store %arg3[%c0_40, %c0_41], %116 {strides = array<i32>} : memref<4x168xf32, #tpu.memory_space<vmem>>, vector<4x168xf32>,
    return
  }
  func.func @transform_0(%arg0: i32) -> (i32, i32) {
    %c0_i32 = arith.constant 0 : i32
    %c0_i32_0 = arith.constant 0 : i32
    %c0_i32_1 = arith.constant 0 : i32
    return %c0_i32, %c0_i32_0 : i32, i32
  }
  func.func @transform_1(%arg0: i32) -> (i32, i32) {
    %c0_i32 = arith.constant 0 : i32
    %c0_i32_0 = arith.constant 0 : i32
    %c0_i32_1 = arith.constant 0 : i32
    return %c0_i32, %c0_i32_0 : i32, i32
  }
  func.func @transform_2(%arg0: i32) -> (i32, i32) {
    %c0_i32 = arith.constant 0 : i32
    %c0_i32_0 = arith.constant 0 : i32
    %c0_i32_1 = arith.constant 0 : i32
    return %c0_i32, %c0_i32_0 : i32, i32
  }
}

</mosaic_0001>

<llo_original>
// kernel: tpu_custom_call.1
$region0: #{tpu_custom_call.1}
  #allocation0 [shape = 'u32[]', space=smem, size = 0x4, offset = 0x4, fixed_abs, tag = 'smem constant byte address 0x4 - core index']
  #allocation1 [shape = 'u32[144,128]{1,0:T(1,128)}', space=vmem, size = 0x12000, scoped, tag = 'internal scratch']
  %s0 = inlined_call_operand.hbm [shape: f32[4,36], index: 0, kind: input, shape index: {}]
  %s1 = inlined_call_operand.hbm [shape: f32[36,36], index: 1, kind: input, shape index: {}]
  %s2 = inlined_call_operand.hbm [shape: f32[4,168], index: 2, kind: output, shape index: {}]
  %s3 = sld [smem:[#allocation0]]
  $region26: #{tpu_custom_call.1} parent=0
    _
  %s5 = ssub.s32 1, %s3
  %s6 = scalar_select 0, %s5, %s3
  $region1: #{tpu_custom_call.1} parent=0
    #allocation2 [shape = 'u8[2048]{0}', space=vmem, size = 0x800, scoped, tag = 'input window, operand 0, single buffered']
    #allocation3 [shape = 's32[1]{0}', space=sflag, size = 0x4, scoped, tag = 'scoped memory for tpu_custom_call.1']
    #allocation4 [shape = 's32[1]{0}', space=sflag, size = 0x4, scoped, tag = 'scoped memory for tpu_custom_call.1']
    #allocation5 [shape = 'u8[20480]{0}', space=vmem, size = 0x5000, scoped, tag = 'input window, operand 1, single buffered']
    #allocation6 [shape = 's32[1]{0}', space=sflag, size = 0x4, scoped, tag = 'scoped memory for tpu_custom_call.1']
    #allocation7 [shape = 'u8[4096]{0}', space=vmem, size = 0x1000, scoped, tag = 'output window, operand 0, single buffered']
    %7 = vsyncpa [#allocation3], 0
    %8 = vsyncpa [#allocation6], 0
    %9 = vsyncpa [#allocation4], 0
    // Predicated region
    $region2: #{tpu_custom_call.1} parent=1 // pred_check
      _
    $region3: #{tpu_custom_call.1} parent=1 // pred_check_branch
      %11 = sbr.rel (0) target = $region5
    $region4: #{tpu_custom_call.1} parent=1 // pred_region
      %s13 = ssub.s32 64, 64
      %14 = vsyncadd [#allocation3], %s13
      %s16 = sshll.u32 [#allocation2], 4
      %s17 = int_to_ptr.vmem [resolvable:$true] %s16
      %19 = dma.hbm_to_vmem [thread:$0]  %s0, 64, %s17, [#allocation3]
    $region5: #{tpu_custom_call.1} parent=1 // pred_fallthru
      _
    // Predicated region
    $region6: #{tpu_custom_call.1} parent=1 // pred_check
      _
    $region7: #{tpu_custom_call.1} parent=1 // pred_check_branch
      %21 = sbr.rel (0) target = $region9
    $region8: #{tpu_custom_call.1} parent=1 // pred_region
      %s23 = ssub.s32 640, 640
      %24 = vsyncadd [#allocation6], %s23
      %s25 = sshll.u32 [#allocation5], 4
      %s26 = int_to_ptr.vmem [resolvable:$true] %s25
      %31 = dma.hbm_to_vmem [thread:$0]  %s1, 640, %s26, [#allocation6], 128, 128, 8
    $region9: #{tpu_custom_call.1} parent=1 // pred_fallthru
      _
    // Predicated region
    $region10: #{tpu_custom_call.1} parent=1 // pred_check
      _
    $region11: #{tpu_custom_call.1} parent=1 // pred_check_branch
      %33 = sbr.rel (0) target = $region13
    $region12: #{tpu_custom_call.1} parent=1 // pred_region
      %34 = dma.done [#allocation3], 64
    $region13: #{tpu_custom_call.1} parent=1 // pred_fallthru
      _
    // Predicated region
    $region14: #{tpu_custom_call.1} parent=1 // pred_check
      _
    $region15: #{tpu_custom_call.1} parent=1 // pred_check_branch
      %36 = sbr.rel (0) target = $region17
    $region16: #{tpu_custom_call.1} parent=1 // pred_region
      %37 = dma.done [#allocation6], 640
    $region17: #{tpu_custom_call.1} parent=1 // pred_fallthru
      _
    %v38 = vld [vmem:[#allocation5] sm:$0xff]
    %v39 = vld [vmem:[#allocation5 + $0x8] sm:$0xff]
    %v40 = vld [vmem:[#allocation5 + $0x10] sm:$0xff]
    %v41 = vld [vmem:[#allocation5 + $0x18] sm:$0xff]
    %v42 = vld [vmem:[#allocation5 + $0x20] sm:$0xf]
    %v43 = vld [vmem:[#allocation2] sm:$0xf]
    %v44 = vmul.f32 %v43, 0.02
    %v45 = vlaneseq
    %v46 = vand.u32 %v45, 127
    %vm47 = vcmp.lt.s32.totalorder %v46, 28
    %vm48 = vcmask 293888
    %v50 = vsel %vm48, 0.0, 0
    %vm52 = vcmask 1043456
    %v54 = vsel %vm52, %v42, 0
    %56 = vmatprep.subr.mxu0 0.0
    %57 = vmatpush1.msra.mxu0 %v38
    %58 = vmatprep.subr.mxu0 0.0
    %59 = vmatpush1.msra.mxu0 %v39
    %60 = vmatprep.subr.mxu0 0.0
    %61 = vmatpush1.msra.mxu0 %v40
    %62 = vmatprep.subr.mxu0 0.0
    %63 = vmatpush1.msra.mxu0 %v41
    %64 = vmatprep.subr.mxu0 0.0
    %65 = vmatpush1.msra.mxu0 %v54
    %66 = vmatprep.subr.mxu0 0.0
    %67 = vmatpush1.msra.mxu0 0.0
    %68 = vmatprep.subr.mxu0 0.0
    %69 = vmatpush1.msra.mxu0 0.0
    %70 = vmatprep.subr.mxu0 0.0
    %71 = vmatpush1.msra.mxu0 0.0
    %72 = vmatprep.subr.mxu0 0.0
    %73 = vmatpush1.msra.mxu0 0.0
    %74 = vmatprep.subr.mxu0 0.0
    %75 = vmatpush1.msra.mxu0 0.0
    %76 = vmatprep.subr.mxu0 0.0
    %77 = vmatpush1.msra.mxu0 0.0
    %78 = vmatprep.subr.mxu0 0.0
    %79 = vmatpush1.msra.mxu0 0.0
    %80 = vmatprep.subr.mxu0 0.0
    %81 = vmatpush1.msra.mxu0 0.0
    %82 = vmatprep.subr.mxu0 0.0
    %83 = vmatpush1.msra.mxu0 0.0
    %84 = vmatprep.subr.mxu0 0.0
    %85 = vmatpush1.msra.mxu0 0.0
    %86 = vmatprep.subr.mxu0 0.0
    %87 = vmatpush1.msra.mxu0 0.0
    %88 = vmatprep.subr.mxu0 0.0
    %89 = vmatpush1.msra.mxu0 0.0
    %90 = vmatprep.subr.mxu0 0.0
    %91 = vmatpush1.msra.mxu0 0.0
    %92 = vmatprep.subr.mxu0 0.0
    %93 = vmatpush1.msra.mxu0 0.0
    %94 = vmatprep.subr.mxu0 0.0
    %95 = vmatpush1.msra.mxu0 0.0
    %96 = vmatprep.subr.mxu0 0.0
    %97 = vmatpush1.msra.mxu0 0.0
    %98 = vmatprep.subr.mxu0 0.0
    %99 = vmatpush1.msra.mxu0 0.0
    %100 = vmatprep.subr.mxu0 0.0
    %101 = vmatpush1.msra.mxu0 0.0
    %102 = vmatprep.subr.mxu0 0.0
    %103 = vmatpush1.msra.mxu0 0.0
    %104 = vmatprep.subr.mxu0 0.0
    %105 = vmatpush1.msra.mxu0 0.0
    %106 = vmatprep.subr.mxu0 0.0
    %107 = vmatpush1.msra.mxu0 0.0
    %108 = vmatprep.subr.mxu0 0.0
    %109 = vmatpush1.msra.mxu0 0.0
    %110 = vmatprep.subr.mxu0 0.0
    %111 = vmatpush1.msra.mxu0 0.0
    %112 = vmatprep.subr.mxu0 0.0
    %113 = vmatpush1.msra.mxu0 0.0
    %114 = vmatprep.subr.mxu0 0.0
    %115 = vmatpush1.msra.mxu0 0.0
    %116 = vmatprep.subr.mxu0 0.0
    %117 = vmatpush1.msra.mxu0 0.0
    %118 = vmatprep.subr.mxu0 0.0
    %119 = vmatpush1.msra.mxu0 0.0
    %120 = vmatprep.mubr.f32.mxu0 0.0
    %121 = vmatmul.mubr.f32.gmra.mrb[0].mxu0 %v50
    %v122 = vpop.f32.mrb[0].mxu0
    %v123 = vadd.f32 0.0, %v122
    %v124 = vpop.f32.mrb[0].mxu0
    %125 = vdwg.mxu0
    %v126 = vsub.f32 %v123, %v44
    %v127 = vmax.f32 %v126, 0.0
    %v128 = vmul.f32 %v123, %v123
    %v129 = vadd.f32 %v128, 0.04
    %v130 = vmax.f32 %v129, 1e-08
    %v131 = vrsqrt.pop %v130
    %v132 = vmul.f32 %v130, %v131
    %vm133 = vcmp.eq.f32.partialorder %v130, inf
    %v134 = vsel %vm133, %v130, %v132
    %vm135 = vcmp.eq.f32.partialorder %v130, 0.0
    %v136 = vand.u32 %v130, 2147483648
    %v137 = vsel %vm135, %v136, %v134
    %v138 = vsub.f32 %v123, %v137
    %v139 = vmul.f32 %v138, 0.5
    %v140 = vsel %vm47, %v127, %v139
    %v142 = vsel %vm48, %v140, 0
    %144 = vmatprep.subr.mxu0 0.0
    %145 = vmatpush1.msra.mxu0 %v38
    %146 = vmatprep.subr.mxu0 0.0
    %147 = vmatpush1.msra.mxu0 %v39
    %148 = vmatprep.subr.mxu0 0.0
    %149 = vmatpush1.msra.mxu0 %v40
    %150 = vmatprep.subr.mxu0 0.0
    %151 = vmatpush1.msra.mxu0 %v41
    %152 = vmatprep.subr.mxu0 0.0
    %153 = vmatpush1.msra.mxu0 %v54
    %154 = vmatprep.subr.mxu0 0.0
    %155 = vmatpush1.msra.mxu0 0.0
    %156 = vmatprep.subr.mxu0 0.0
    %157 = vmatpush1.msra.mxu0 0.0
    %158 = vmatprep.subr.mxu0 0.0
    %159 = vmatpush1.msra.mxu0 0.0
    %160 = vmatprep.subr.mxu0 0.0
    %161 = vmatpush1.msra.mxu0 0.0
    %162 = vmatprep.subr.mxu0 0.0
    %163 = vmatpush1.msra.mxu0 0.0
    %164 = vmatprep.subr.mxu0 0.0
    %165 = vmatpush1.msra.mxu0 0.0
    %166 = vmatprep.subr.mxu0 0.0
    %167 = vmatpush1.msra.mxu0 0.0
    %168 = vmatprep.subr.mxu0 0.0
    %169 = vmatpush1.msra.mxu0 0.0
    %170 = vmatprep.subr.mxu0 0.0
    %171 = vmatpush1.msra.mxu0 0.0
    %172 = vmatprep.subr.mxu0 0.0
    %173 = vmatpush1.msra.mxu0 0.0
    %174 = vmatprep.subr.mxu0 0.0
    %175 = vmatpush1.msra.mxu0 0.0
    %176 = vmatprep.subr.mxu0 0.0
    %177 = vmatpush1.msra.mxu0 0.0
    %178 = vmatprep.subr.mxu0 0.0
    %179 = vmatpush1.msra.mxu0 0.0
    %180 = vmatprep.subr.mxu0 0.0
    %181 = vmatpush1.msra.mxu0 0.0
    %182 = vmatprep.subr.mxu0 0.0
    %183 = vmatpush1.msra.mxu0 0.0
    %184 = vmatprep.subr.mxu0 0.0
    %185 = vmatpush1.msra.mxu0 0.0
    %186 = vmatprep.subr.mxu0 0.0
    %187 = vmatpush1.msra.mxu0 0.0
    %188 = vmatprep.subr.mxu0 0.0
    %189 = vmatpush1.msra.mxu0 0.0
    %190 = vmatprep.subr.mxu0 0.0
    %191 = vmatpush1.msra.mxu0 0.0
    %192 = vmatprep.subr.mxu0 0.0
    %193 = vmatpush1.msra.mxu0 0.0
    %194 = vmatprep.subr.mxu0 0.0
    %195 = vmatpush1.msra.mxu0 0.0
    %196 = vmatprep.subr.mxu0 0.0
    %197 = vmatpush1.msra.mxu0 0.0
    %198 = vmatprep.subr.mxu0 0.0
    %199 = vmatpush1.msra.mxu0 0.0
    %200 = vmatprep.subr.mxu0 0.0
    %201 = vmatpush1.msra.mxu0 0.0
    %202 = vmatprep.subr.mxu0 0.0
    %203 = vmatpush1.msra.mxu0 0.0
    %204 = vmatprep.subr.mxu0 0.0
    %205 = vmatpush1.msra.mxu0 0.0
    %206 = vmatprep.subr.mxu0 0.0
    %207 = vmatpush1.msra.mxu0 0.0
    %208 = vmatprep.mubr.f32.mxu0 0.0
    %209 = vmatmul.mubr.f32.gmra.mrb[0].mxu0 %v142
    %v210 = vpop.f32.mrb[0].mxu0
    %v211 = vadd.f32 0.0, %v210
    %v212 = vpop.f32.mrb[0].mxu0
    %213 = vdwg.mxu0
    %v214 = vsub.f32 0.0, %v123
    %v215 = vadd.f32 %v214, %v211
    %v217 = vsel %vm48, %v215, 0
    %219 = vmatprep.subr.mxu0 0.0
    %220 = vmatpush1.msra.mxu0 %v38
    %221 = vmatprep.subr.mxu0 0.0
    %222 = vmatpush1.msra.mxu0 %v39
    %223 = vmatprep.subr.mxu0 0.0
    %224 = vmatpush1.msra.mxu0 %v40
    %225 = vmatprep.subr.mxu0 0.0
    %226 = vmatpush1.msra.mxu0 %v41
    %227 = vmatprep.subr.mxu0 0.0
    %228 = vmatpush1.msra.mxu0 %v54
    %229 = vmatprep.subr.mxu0 0.0
    %230 = vmatpush1.msra.mxu0 0.0
    %231 = vmatprep.subr.mxu0 0.0
    %232 = vmatpush1.msra.mxu0 0.0
    %233 = vmatprep.subr.mxu0 0.0
    %234 = vmatpush1.msra.mxu0 0.0
    %235 = vmatprep.subr.mxu0 0.0
    %236 = vmatpush1.msra.mxu0 0.0
    %237 = vmatprep.subr.mxu0 0.0
    %238 = vmatpush1.msra.mxu0 0.0
    %239 = vmatprep.subr.mxu0 0.0
    %240 = vmatpush1.msra.mxu0 0.0
    %241 = vmatprep.subr.mxu0 0.0
    %242 = vmatpush1.msra.mxu0 0.0
    %243 = vmatprep.subr.mxu0 0.0
    %244 = vmatpush1.msra.mxu0 0.0
    %245 = vmatprep.subr.mxu0 0.0
    %246 = vmatpush1.msra.mxu0 0.0
    %247 = vmatprep.subr.mxu0 0.0
    %248 = vmatpush1.msra.mxu0 0.0
    %249 = vmatprep.subr.mxu0 0.0
    %250 = vmatpush1.msra.mxu0 0.0
    %251 = vmatprep.subr.mxu0 0.0
    %252 = vmatpush1.msra.mxu0 0.0
    %253 = vmatprep.subr.mxu0 0.0
    %254 = vmatpush1.msra.mxu0 0.0
    %255 = vmatprep.subr.mxu0 0.0
    %256 = vmatpush1.msra.mxu0 0.0
    %257 = vmatprep.subr.mxu0 0.0
    %258 = vmatpush1.msra.mxu0 0.0
    %259 = vmatprep.subr.mxu0 0.0
    %260 = vmatpush1.msra.mxu0 0.0
    %261 = vmatprep.subr.mxu0 0.0
    %262 = vmatpush1.msra.mxu0 0.0
    %263 = vmatprep.subr.mxu0 0.0
    %264 = vmatpush1.msra.mxu0 0.0
    %265 = vmatprep.subr.mxu0 0.0
    %266 = vmatpush1.msra.mxu0 0.0
    %267 = vmatprep.subr.mxu0 0.0
    %268 = vmatpush1.msra.mxu0 0.0
    %269 = vmatprep.subr.mxu0 0.0
    %270 = vmatpush1.msra.mxu0 0.0
    %271 = vmatprep.subr.mxu0 0.0
    %272 = vmatpush1.msra.mxu0 0.0
    %273 = vmatprep.subr.mxu0 0.0
    %274 = vmatpush1.msra.mxu0 0.0
    %275 = vmatprep.subr.mxu0 0.0
    %276 = vmatpush1.msra.mxu0 0.0
    %277 = vmatprep.subr.mxu0 0.0
    %278 = vmatpush1.msra.mxu0 0.0
    %279 = vmatprep.subr.mxu0 0.0
    %280 = vmatpush1.msra.mxu0 0.0
    %281 = vmatprep.subr.mxu0 0.0
    %282 = vmatpush1.msra.mxu0 0.0
    %283 = vmatprep.mubr.f32.mxu0 0.0
    %284 = vmatmul.mubr.f32.gmra.mrb[0].mxu0 %v217
    %v285 = vpop.f32.mrb[0].mxu0
    %v286 = vadd.f32 0.0, %v285
    %v287 = vpop.f32.mrb[0].mxu0
    %288 = vdwg.mxu0
    %v289 = vsub.f32 %v286, %v44
    %v290 = vmax.f32 %v289, 0.0
    %v291 = vmul.f32 %v286, %v286
    %v292 = vadd.f32 %v291, 0.04
    %v293 = vmax.f32 %v292, 1e-08
    %v294 = vrsqrt.pop %v293
    %v295 = vmul.f32 %v293, %v294
    %vm296 = vcmp.eq.f32.partialorder %v293, inf
    %v297 = vsel %vm296, %v293, %v295
    %vm298 = vcmp.eq.f32.partialorder %v293, 0.0
    %v299 = vand.u32 %v293, 2147483648
    %v300 = vsel %vm298, %v299, %v297
    %v301 = vsub.f32 %v286, %v300
    %v302 = vmul.f32 %v301, 0.5
    %v303 = vsel %vm47, %v290, %v302
    %v305 = vsel %vm48, %v303, 0
    %307 = vmatprep.subr.mxu0 0.0
    %308 = vmatpush1.msra.mxu0 %v38
    %309 = vmatprep.subr.mxu0 0.0
    %310 = vmatpush1.msra.mxu0 %v39
    %311 = vmatprep.subr.mxu0 0.0
    %312 = vmatpush1.msra.mxu0 %v40
    %313 = vmatprep.subr.mxu0 0.0
    %314 = vmatpush1.msra.mxu0 %v41
    %315 = vmatprep.subr.mxu0 0.0
    %316 = vmatpush1.msra.mxu0 %v54
    %317 = vmatprep.subr.mxu0 0.0
    %318 = vmatpush1.msra.mxu0 0.0
    %319 = vmatprep.subr.mxu0 0.0
    %320 = vmatpush1.msra.mxu0 0.0
    %321 = vmatprep.subr.mxu0 0.0
    %322 = vmatpush1.msra.mxu0 0.0
    %323 = vmatprep.subr.mxu0 0.0
    %324 = vmatpush1.msra.mxu0 0.0
    %325 = vmatprep.subr.mxu0 0.0
    %326 = vmatpush1.msra.mxu0 0.0
    %327 = vmatprep.subr.mxu0 0.0
    %328 = vmatpush1.msra.mxu0 0.0
    %329 = vmatprep.subr.mxu0 0.0
    %330 = vmatpush1.msra.mxu0 0.0
    %331 = vmatprep.subr.mxu0 0.0
    %332 = vmatpush1.msra.mxu0 0.0
    %333 = vmatprep.subr.mxu0 0.0
    %334 = vmatpush1.msra.mxu0 0.0
    %335 = vmatprep.subr.mxu0 0.0
    %336 = vmatpush1.msra.mxu0 0.0
    %337 = vmatprep.subr.mxu0 0.0
    %338 = vmatpush1.msra.mxu0 0.0
    %339 = vmatprep.subr.mxu0 0.0
    %340 = vmatpush1.msra.mxu0 0.0
    %341 = vmatprep.subr.mxu0 0.0
    %342 = vmatpush1.msra.mxu0 0.0
    %343 = vmatprep.subr.mxu0 0.0
    %344 = vmatpush1.msra.mxu0 0.0
    %345 = vmatprep.subr.mxu0 0.0
    %346 = vmatpush1.msra.mxu0 0.0
    %347 = vmatprep.subr.mxu0 0.0
    %348 = vmatpush1.msra.mxu0 0.0
    %349 = vmatprep.subr.mxu0 0.0
    %350 = vmatpush1.msra.mxu0 0.0
    %351 = vmatprep.subr.mxu0 0.0
    %352 = vmatpush1.msra.mxu0 0.0
    %353 = vmatprep.subr.mxu0 0.0
    %354 = vmatpush1.msra.mxu0 0.0
    %355 = vmatprep.subr.mxu0 0.0
    %356 = vmatpush1.msra.mxu0 0.0
    %357 = vmatprep.subr.mxu0 0.0
    %358 = vmatpush1.msra.mxu0 0.0
    %359 = vmatprep.subr.mxu0 0.0
    %360 = vmatpush1.msra.mxu0 0.0
    %361 = vmatprep.subr.mxu0 0.0
    %362 = vmatpush1.msra.mxu0 0.0
    %363 = vmatprep.subr.mxu0 0.0
    %364 = vmatpush1.msra.mxu0 0.0
    %365 = vmatprep.subr.mxu0 0.0
    %366 = vmatpush1.msra.mxu0 0.0
    %367 = vmatprep.subr.mxu0 0.0
    %368 = vmatpush1.msra.mxu0 0.0
    %369 = vmatprep.subr.mxu0 0.0
    %370 = vmatpush1.msra.mxu0 0.0
    %371 = vmatprep.mubr.f32.mxu0 0.0
    %372 = vmatmul.mubr.f32.gmra.mrb[0].mxu0 %v305
    %v373 = vpop.f32.mrb[0].mxu0
    %v374 = vadd.f32 0.0, %v373
    %v375 = vpop.f32.mrb[0].mxu0
    %376 = vdwg.mxu0
    %v377 = vsub.f32 %v215, %v286
    %v378 = vadd.f32 %v377, %v374
    %v380 = vsel %vm48, %v378, 0
    %382 = vmatprep.subr.mxu0 0.0
    %383 = vmatpush1.msra.mxu0 %v38
    %384 = vmatprep.subr.mxu0 0.0
    %385 = vmatpush1.msra.mxu0 %v39
    %386 = vmatprep.subr.mxu0 0.0
    %387 = vmatpush1.msra.mxu0 %v40
    %388 = vmatprep.subr.mxu0 0.0
    %389 = vmatpush1.msra.mxu0 %v41
    %390 = vmatprep.subr.mxu0 0.0
    %391 = vmatpush1.msra.mxu0 %v54
    %392 = vmatprep.subr.mxu0 0.0
    %393 = vmatpush1.msra.mxu0 0.0
    %394 = vmatprep.subr.mxu0 0.0
    %395 = vmatpush1.msra.mxu0 0.0
    %396 = vmatprep.subr.mxu0 0.0
    %397 = vmatpush1.msra.mxu0 0.0
    %398 = vmatprep.subr.mxu0 0.0
    %399 = vmatpush1.msra.mxu0 0.0
    %400 = vmatprep.subr.mxu0 0.0
    %401 = vmatpush1.msra.mxu0 0.0
    %402 = vmatprep.subr.mxu0 0.0
    %403 = vmatpush1.msra.mxu0 0.0
    %404 = vmatprep.subr.mxu0 0.0
    %405 = vmatpush1.msra.mxu0 0.0
    %406 = vmatprep.subr.mxu0 0.0
    %407 = vmatpush1.msra.mxu0 0.0
    %408 = vmatprep.subr.mxu0 0.0
    %409 = vmatpush1.msra.mxu0 0.0
    %410 = vmatprep.subr.mxu0 0.0
    %411 = vmatpush1.msra.mxu0 0.0
    %412 = vmatprep.subr.mxu0 0.0
    %413 = vmatpush1.msra.mxu0 0.0
    %414 = vmatprep.subr.mxu0 0.0
    %415 = vmatpush1.msra.mxu0 0.0
    %416 = vmatprep.subr.mxu0 0.0
    %417 = vmatpush1.msra.mxu0 0.0
    %418 = vmatprep.subr.mxu0 0.0
    %419 = vmatpush1.msra.mxu0 0.0
    %420 = vmatprep.subr.mxu0 0.0
    %421 = vmatpush1.msra.mxu0 0.0
    %422 = vmatprep.subr.mxu0 0.0
    %423 = vmatpush1.msra.mxu0 0.0
    %424 = vmatprep.subr.mxu0 0.0
    %425 = vmatpush1.msra.mxu0 0.0
    %426 = vmatprep.subr.mxu0 0.0
    %427 = vmatpush1.msra.mxu0 0.0
    %428 = vmatprep.subr.mxu0 0.0
    %429 = vmatpush1.msra.mxu0 0.0
    %430 = vmatprep.subr.mxu0 0.0
    %431 = vmatpush1.msra.mxu0 0.0
    %432 = vmatprep.subr.mxu0 0.0
    %433 = vmatpush1.msra.mxu0 0.0
    %434 = vmatprep.subr.mxu0 0.0
    %435 = vmatpush1.msra.mxu0 0.0
    %436 = vmatprep.subr.mxu0 0.0
    %437 = vmatpush1.msra.mxu0 0.0
    %438 = vmatprep.subr.mxu0 0.0
    %439 = vmatpush1.msra.mxu0 0.0
    %440 = vmatprep.subr.mxu0 0.0
    %441 = vmatpush1.msra.mxu0 0.0
    %442 = vmatprep.subr.mxu0 0.0
    %443 = vmatpush1.msra.mxu0 0.0
    %444 = vmatprep.subr.mxu0 0.0
    %445 = vmatpush1.msra.mxu0 0.0
    %446 = vmatprep.mubr.f32.mxu0 0.0
    %447 = vmatmul.mubr.f32.gmra.mrb[0].mxu0 %v380
    %v448 = vpop.f32.mrb[0].mxu0
    %v449 = vadd.f32 0.0, %v448
    %v450 = vpop.f32.mrb[0].mxu0
    %451 = vdwg.mxu0
    %v452 = vsub.f32 %v449, %v44
    %v453 = vmax.f32 %v452, 0.0
    %v454 = vmul.f32 %v449, %v449
    %v455 = vadd.f32 %v454, 0.04
    %v456 = vmax.f32 %v455, 1e-08
    %v457 = vrsqrt.pop %v456
    %v458 = vmul.f32 %v456, %v457
    %vm459 = vcmp.eq.f32.partialorder %v456, inf
    %v460 = vsel %vm459, %v456, %v458
    %vm461 = vcmp.eq.f32.partialorder %v456, 0.0
    %v462 = vand.u32 %v456, 2147483648
    %v463 = vsel %vm461, %v462, %v460
    %v464 = vsub.f32 %v449, %v463
    %v465 = vmul.f32 %v464, 0.5
    %v466 = vsel %vm47, %v453, %v465
    %v468 = vsel %vm48, %v466, 0
    %470 = vmatprep.subr.mxu0 0.0
    %471 = vmatpush1.msra.mxu0 %v38
    %472 = vmatprep.subr.mxu0 0.0
    %473 = vmatpush1.msra.mxu0 %v39
    %474 = vmatprep.subr.mxu0 0.0
    %475 = vmatpush1.msra.mxu0 %v40
    %476 = vmatprep.subr.mxu0 0.0
    %477 = vmatpush1.msra.mxu0 %v41
    %478 = vmatprep.subr.mxu0 0.0
    %479 = vmatpush1.msra.mxu0 %v54
    %480 = vmatprep.subr.mxu0 0.0
    %481 = vmatpush1.msra.mxu0 0.0
    %482 = vmatprep.subr.mxu0 0.0
    %483 = vmatpush1.msra.mxu0 0.0
    %484 = vmatprep.subr.mxu0 0.0
    %485 = vmatpush1.msra.mxu0 0.0
    %486 = vmatprep.subr.mxu0 0.0
    %487 = vmatpush1.msra.mxu0 0.0
    %488 = vmatprep.subr.mxu0 0.0
    %489 = vmatpush1.msra.mxu0 0.0
    %490 = vmatprep.subr.mxu0 0.0
    %491 = vmatpush1.msra.mxu0 0.0
    %492 = vmatprep.subr.mxu0 0.0
    %493 = vmatpush1.msra.mxu0 0.0
    %494 = vmatprep.subr.mxu0 0.0
    %495 = vmatpush1.msra.mxu0 0.0
    %496 = vmatprep.subr.mxu0 0.0
    %497 = vmatpush1.msra.mxu0 0.0
    %498 = vmatprep.subr.mxu0 0.0
    %499 = vmatpush1.msra.mxu0 0.0
    %500 = vmatprep.subr.mxu0 0.0
    %501 = vmatpush1.msra.mxu0 0.0
    %502 = vmatprep.subr.mxu0 0.0
    %503 = vmatpush1.msra.mxu0 0.0
    %504 = vmatprep.subr.mxu0 0.0
    %505 = vmatpush1.msra.mxu0 0.0
    %506 = vmatprep.subr.mxu0 0.0
    %507 = vmatpush1.msra.mxu0 0.0
    %508 = vmatprep.subr.mxu0 0.0
    %509 = vmatpush1.msra.mxu0 0.0
    %510 = vmatprep.subr.mxu0 0.0
    %511 = vmatpush1.msra.mxu0 0.0
    %512 = vmatprep.subr.mxu0 0.0
    %513 = vmatpush1.msra.mxu0 0.0
    %514 = vmatprep.subr.mxu0 0.0
    %515 = vmatpush1.msra.mxu0 0.0
    %516 = vmatprep.subr.mxu0 0.0
    %517 = vmatpush1.msra.mxu0 0.0
    %518 = vmatprep.subr.mxu0 0.0
    %519 = vmatpush1.msra.mxu0 0.0
    %520 = vmatprep.subr.mxu0 0.0
    %521 = vmatpush1.msra.mxu0 0.0
    %522 = vmatprep.subr.mxu0 0.0
    %523 = vmatpush1.msra.mxu0 0.0
    %524 = vmatprep.subr.mxu0 0.0
    %525 = vmatpush1.msra.mxu0 0.0
    %526 = vmatprep.subr.mxu0 0.0
    %527 = vmatpush1.msra.mxu0 0.0
    %528 = vmatprep.subr.mxu0 0.0
    %529 = vmatpush1.msra.mxu0 0.0
    %530 = vmatprep.subr.mxu0 0.0
    %531 = vmatpush1.msra.mxu0 0.0
    %532 = vmatprep.subr.mxu0 0.0
    %533 = vmatpush1.msra.mxu0 0.0
    %534 = vmatprep.mubr.f32.mxu0 0.0
    %535 = vmatmul.mubr.f32.gmra.mrb[0].mxu0 %v468
    %v536 = vpop.f32.mrb[0].mxu0
    %v537 = vadd.f32 0.0, %v536
    %v538 = vpop.f32.mrb[0].mxu0
    %539 = vdwg.mxu0
    %v540 = vsub.f32 %v378, %v449
    %v541 = vadd.f32 %v540, %v537
    %v543 = vsel %vm48, %v541, 0
    %545 = vmatprep.subr.mxu0 0.0
    %546 = vmatpush1.msra.mxu0 %v38
    %547 = vmatprep.subr.mxu0 0.0
    %548 = vmatpush1.msra.mxu0 %v39
    %549 = vmatprep.subr.mxu0 0.0
    %550 = vmatpush1.msra.mxu0 %v40
    %551 = vmatprep.subr.mxu0 0.0
    %552 = vmatpush1.msra.mxu0 %v41
    %553 = vmatprep.subr.mxu0 0.0
    %554 = vmatpush1.msra.mxu0 %v54
    %555 = vmatprep.subr.mxu0 0.0
    %556 = vmatpush1.msra.mxu0 0.0
    %557 = vmatprep.subr.mxu0 0.0
    %558 = vmatpush1.msra.mxu0 0.0
    %559 = vmatprep.subr.mxu0 0.0
    %560 = vmatpush1.msra.mxu0 0.0
    %561 = vmatprep.subr.mxu0 0.0
    %562 = vmatpush1.msra.mxu0 0.0
    %563 = vmatprep.subr.mxu0 0.0
    %564 = vmatpush1.msra.mxu0 0.0
    %565 = vmatprep.subr.mxu0 0.0
    %566 = vmatpush1.msra.mxu0 0.0
    %567 = vmatprep.subr.mxu0 0.0
    %568 = vmatpush1.msra.mxu0 0.0
    %569 = vmatprep.subr.mxu0 0.0
    %570 = vmatpush1.msra.mxu0 0.0
    %571 = vmatprep.subr.mxu0 0.0
    %572 = vmatpush1.msra.mxu0 0.0
    %573 = vmatprep.subr.mxu0 0.0
    %574 = vmatpush1.msra.mxu0 0.0
    %575 = vmatprep.subr.mxu0 0.0
    %576 = vmatpush1.msra.mxu0 0.0
    %577 = vmatprep.subr.mxu0 0.0
    %578 = vmatpush1.msra.mxu0 0.0
    %579 = vmatprep.subr.mxu0 0.0
    %580 = vmatpush1.msra.mxu0 0.0
    %581 = vmatprep.subr.mxu0 0.0
    %582 = vmatpush1.msra.mxu0 0.0
    %583 = vmatprep.subr.mxu0 0.0
    %584 = vmatpush1.msra.mxu0 0.0
    %585 = vmatprep.subr.mxu0 0.0
    %586 = vmatpush1.msra.mxu0 0.0
    %587 = vmatprep.subr.mxu0 0.0
    %588 = vmatpush1.msra.mxu0 0.0
    %589 = vmatprep.subr.mxu0 0.0
    %590 = vmatpush1.msra.mxu0 0.0
    %591 = vmatprep.subr.mxu0 0.0
    %592 = vmatpush1.msra.mxu0 0.0
    %593 = vmatprep.subr.mxu0 0.0
    %594 = vmatpush1.msra.mxu0 0.0
    %595 = vmatprep.subr.mxu0 0.0
    %596 = vmatpush1.msra.mxu0 0.0
    %597 = vmatprep.subr.mxu0 0.0
    %598 = vmatpush1.msra.mxu0 0.0
    %599 = vmatprep.subr.mxu0 0.0
    %600 = vmatpush1.msra.mxu0 0.0
    %601 = vmatprep.subr.mxu0 0.0
    %602 = vmatpush1.msra.mxu0 0.0
    %603 = vmatprep.subr.mxu0 0.0
    %604 = vmatpush1.msra.mxu0 0.0
    %605 = vmatprep.subr.mxu0 0.0
    %606 = vmatpush1.msra.mxu0 0.0
    %607 = vmatprep.subr.mxu0 0.0
    %608 = vmatpush1.msra.mxu0 0.0
    %609 = vmatprep.mubr.f32.mxu0 0.0
    %610 = vmatmul.mubr.f32.gmra.mrb[0].mxu0 %v543
    %v611 = vpop.f32.mrb[0].mxu0
    %v612 = vadd.f32 0.0, %v611
    %v613 = vpop.f32.mrb[0].mxu0
    %614 = vdwg.mxu0
    %v615 = vsub.f32 %v612, %v44
    %v616 = vmax.f32 %v615, 0.0
    %v617 = vmul.f32 %v612, %v612
    %v618 = vadd.f32 %v617, 0.04
    %v619 = vmax.f32 %v618, 1e-08
    %v620 = vrsqrt.pop %v619
    %v621 = vmul.f32 %v619, %v620
    %vm622 = vcmp.eq.f32.partialorder %v619, inf
    %v623 = vsel %vm622, %v619, %v621
    %vm624 = vcmp.eq.f32.partialorder %v619, 0.0
    %v625 = vand.u32 %v619, 2147483648
    %v626 = vsel %vm624, %v625, %v623
    %v627 = vsub.f32 %v612, %v626
    %v628 = vmul.f32 %v627, 0.5
    %v629 = vsel %vm47, %v616, %v628
    %v631 = vsel %vm48, %v629, 0
    %633 = vmatprep.subr.mxu0 0.0
    %634 = vmatpush1.msra.mxu0 %v38
    %635 = vmatprep.subr.mxu0 0.0
    %636 = vmatpush1.msra.mxu0 %v39
    %637 = vmatprep.subr.mxu0 0.0
    %638 = vmatpush1.msra.mxu0 %v40
    %639 = vmatprep.subr.mxu0 0.0
    %640 = vmatpush1.msra.mxu0 %v41
    %641 = vmatprep.subr.mxu0 0.0
    %642 = vmatpush1.msra.mxu0 %v54
    %643 = vmatprep.subr.mxu0 0.0
    %644 = vmatpush1.msra.mxu0 0.0
    %645 = vmatprep.subr.mxu0 0.0
    %646 = vmatpush1.msra.mxu0 0.0
    %647 = vmatprep.subr.mxu0 0.0
    %648 = vmatpush1.msra.mxu0 0.0
    %649 = vmatprep.subr.mxu0 0.0
    %650 = vmatpush1.msra.mxu0 0.0
    %651 = vmatprep.subr.mxu0 0.0
    %652 = vmatpush1.msra.mxu0 0.0
    %653 = vmatprep.subr.mxu0 0.0
    %654 = vmatpush1.msra.mxu0 0.0
    %655 = vmatprep.subr.mxu0 0.0
    %656 = vmatpush1.msra.mxu0 0.0
    %657 = vmatprep.subr.mxu0 0.0
    %658 = vmatpush1.msra.mxu0 0.0
    %659 = vmatprep.subr.mxu0 0.0
    %660 = vmatpush1.msra.mxu0 0.0
    %661 = vmatprep.subr.mxu0 0.0
    %662 = vmatpush1.msra.mxu0 0.0
    %663 = vmatprep.subr.mxu0 0.0
    %664 = vmatpush1.msra.mxu0 0.0
    %665 = vmatprep.subr.mxu0 0.0
    %666 = vmatpush1.msra.mxu0 0.0
    %667 = vmatprep.subr.mxu0 0.0
    %668 = vmatpush1.msra.mxu0 0.0
    %669 = vmatprep.subr.mxu0 0.0
    %670 = vmatpush1.msra.mxu0 0.0
    %671 = vmatprep.subr.mxu0 0.0
    %672 = vmatpush1.msra.mxu0 0.0
    %673 = vmatprep.subr.mxu0 0.0
    %674 = vmatpush1.msra.mxu0 0.0
    %675 = vmatprep.subr.mxu0 0.0
    %676 = vmatpush1.msra.mxu0 0.0
    %677 = vmatprep.subr.mxu0 0.0
    %678 = vmatpush1.msra.mxu0 0.0
    %679 = vmatprep.subr.mxu0 0.0
    %680 = vmatpush1.msra.mxu0 0.0
    %681 = vmatprep.subr.mxu0 0.0
    %682 = vmatpush1.msra.mxu0 0.0
    %683 = vmatprep.subr.mxu0 0.0
    %684 = vmatpush1.msra.mxu0 0.0
    %685 = vmatprep.subr.mxu0 0.0
    %686 = vmatpush1.msra.mxu0 0.0
    %687 = vmatprep.subr.mxu0 0.0
    %688 = vmatpush1.msra.mxu0 0.0
    %689 = vmatprep.subr.mxu0 0.0
    %690 = vmatpush1.msra.mxu0 0.0
    %691 = vmatprep.subr.mxu0 0.0
    %692 = vmatpush1.msra.mxu0 0.0
    %693 = vmatprep.subr.mxu0 0.0
    %694 = vmatpush1.msra.mxu0 0.0
    %695 = vmatprep.subr.mxu0 0.0
    %696 = vmatpush1.msra.mxu0 0.0
    %697 = vmatprep.mubr.f32.mxu0 0.0
    %698 = vmatmul.mubr.f32.gmra.mrb[0].mxu0 %v631
    %v699 = vpop.f32.mrb[0].mxu0
    %v700 = vadd.f32 0.0, %v699
    %v701 = vpop.f32.mrb[0].mxu0
    %702 = vdwg.mxu0
    %v703 = vsub.f32 %v541, %v612
    %v704 = vadd.f32 %v703, %v700
    %v706 = vsel %vm48, %v704, 0
    %708 = vmatprep.subr.mxu0 0.0
    %709 = vmatpush1.msra.mxu0 %v38
    %710 = vmatprep.subr.mxu0 0.0
    %711 = vmatpush1.msra.mxu0 %v39
    %712 = vmatprep.subr.mxu0 0.0
    %713 = vmatpush1.msra.mxu0 %v40
    %714 = vmatprep.subr.mxu0 0.0
    %715 = vmatpush1.msra.mxu0 %v41
    %716 = vmatprep.subr.mxu0 0.0
    %717 = vmatpush1.msra.mxu0 %v54
    %718 = vmatprep.subr.mxu0 0.0
    %719 = vmatpush1.msra.mxu0 0.0
    %720 = vmatprep.subr.mxu0 0.0
    %721 = vmatpush1.msra.mxu0 0.0
    %722 = vmatprep.subr.mxu0 0.0
    %723 = vmatpush1.msra.mxu0 0.0
    %724 = vmatprep.subr.mxu0 0.0
    %725 = vmatpush1.msra.mxu0 0.0
    %726 = vmatprep.subr.mxu0 0.0
    %727 = vmatpush1.msra.mxu0 0.0
    %728 = vmatprep.subr.mxu0 0.0
    %729 = vmatpush1.msra.mxu0 0.0
    %730 = vmatprep.subr.mxu0 0.0
    %731 = vmatpush1.msra.mxu0 0.0
    %732 = vmatprep.subr.mxu0 0.0
    %733 = vmatpush1.msra.mxu0 0.0
    %734 = vmatprep.subr.mxu0 0.0
    %735 = vmatpush1.msra.mxu0 0.0
    %736 = vmatprep.subr.mxu0 0.0
    %737 = vmatpush1.msra.mxu0 0.0
    %738 = vmatprep.subr.mxu0 0.0
    %739 = vmatpush1.msra.mxu0 0.0
    %740 = vmatprep.subr.mxu0 0.0
    %741 = vmatpush1.msra.mxu0 0.0
    %742 = vmatprep.subr.mxu0 0.0
    %743 = vmatpush1.msra.mxu0 0.0
    %744 = vmatprep.subr.mxu0 0.0
    %745 = vmatpush1.msra.mxu0 0.0
    %746 = vmatprep.subr.mxu0 0.0
    %747 = vmatpush1.msra.mxu0 0.0
    %748 = vmatprep.subr.mxu0 0.0
    %749 = vmatpush1.msra.mxu0 0.0
    %750 = vmatprep.subr.mxu0 0.0
    %751 = vmatpush1.msra.mxu0 0.0
    %752 = vmatprep.subr.mxu0 0.0
    %753 = vmatpush1.msra.mxu0 0.0
    %754 = vmatprep.subr.mxu0 0.0
    %755 = vmatpush1.msra.mxu0 0.0
    %756 = vmatprep.subr.mxu0 0.0
    %757 = vmatpush1.msra.mxu0 0.0
    %758 = vmatprep.subr.mxu0 0.0
    %759 = vmatpush1.msra.mxu0 0.0
    %760 = vmatprep.subr.mxu0 0.0
    %761 = vmatpush1.msra.mxu0 0.0
    %762 = vmatprep.subr.mxu0 0.0
    %763 = vmatpush1.msra.mxu0 0.0
    %764 = vmatprep.subr.mxu0 0.0
    %765 = vmatpush1.msra.mxu0 0.0
    %766 = vmatprep.subr.mxu0 0.0
    %767 = vmatpush1.msra.mxu0 0.0
    %768 = vmatprep.subr.mxu0 0.0
    %769 = vmatpush1.msra.mxu0 0.0
    %770 = vmatprep.subr.mxu0 0.0
    %771 = vmatpush1.msra.mxu0 0.0
    %772 = vmatprep.mubr.f32.mxu0 0.0
    %773 = vmatmul.mubr.f32.gmra.mrb[0].mxu0 %v706
    %v774 = vpop.f32.mrb[0].mxu0
    %v775 = vadd.f32 0.0, %v774
    %v776 = vpop.f32.mrb[0].mxu0
    %777 = vdwg.mxu0
    %v778 = vsub.f32 %v775, %v44
    %v779 = vmax.f32 %v778, 0.0
    %v780 = vmul.f32 %v775, %v775
    %v781 = vadd.f32 %v780, 0.04
    %v782 = vmax.f32 %v781, 1e-08
    %v783 = vrsqrt.pop %v782
    %v784 = vmul.f32 %v782, %v783
    %vm785 = vcmp.eq.f32.partialorder %v782, inf
    %v786 = vsel %vm785, %v782, %v784
    %vm787 = vcmp.eq.f32.partialorder %v782, 0.0
    %v788 = vand.u32 %v782, 2147483648
    %v789 = vsel %vm787, %v788, %v786
    %v790 = vsub.f32 %v775, %v789
    %v791 = vmul.f32 %v790, 0.5
    %v792 = vsel %vm47, %v779, %v791
    %v794 = vsel %vm48, %v792, 0
    %796 = vmatprep.subr.mxu0 0.0
    %797 = vmatpush1.msra.mxu0 %v38
    %798 = vmatprep.subr.mxu0 0.0
    %799 = vmatpush1.msra.mxu0 %v39
    %800 = vmatprep.subr.mxu0 0.0
    %801 = vmatpush1.msra.mxu0 %v40
    %802 = vmatprep.subr.mxu0 0.0
    %803 = vmatpush1.msra.mxu0 %v41
    %804 = vmatprep.subr.mxu0 0.0
    %805 = vmatpush1.msra.mxu0 %v54
    %806 = vmatprep.subr.mxu0 0.0
    %807 = vmatpush1.msra.mxu0 0.0
    %808 = vmatprep.subr.mxu0 0.0
    %809 = vmatpush1.msra.mxu0 0.0
    %810 = vmatprep.subr.mxu0 0.0
    %811 = vmatpush1.msra.mxu0 0.0
    %812 = vmatprep.subr.mxu0 0.0
    %813 = vmatpush1.msra.mxu0 0.0
    %814 = vmatprep.subr.mxu0 0.0
    %815 = vmatpush1.msra.mxu0 0.0
    %816 = vmatprep.subr.mxu0 0.0
    %817 = vmatpush1.msra.mxu0 0.0
    %818 = vmatprep.subr.mxu0 0.0
    %819 = vmatpush1.msra.mxu0 0.0
    %820 = vmatprep.subr.mxu0 0.0
    %821 = vmatpush1.msra.mxu0 0.0
    %822 = vmatprep.subr.mxu0 0.0
    %823 = vmatpush1.msra.mxu0 0.0
    %824 = vmatprep.subr.mxu0 0.0
    %825 = vmatpush1.msra.mxu0 0.0
    %826 = vmatprep.subr.mxu0 0.0
    %827 = vmatpush1.msra.mxu0 0.0
    %828 = vmatprep.subr.mxu0 0.0
    %829 = vmatpush1.msra.mxu0 0.0
    %830 = vmatprep.subr.mxu0 0.0
    %831 = vmatpush1.msra.mxu0 0.0
    %832 = vmatprep.subr.mxu0 0.0
    %833 = vmatpush1.msra.mxu0 0.0
    %834 = vmatprep.subr.mxu0 0.0
    %835 = vmatpush1.msra.mxu0 0.0
    %836 = vmatprep.subr.mxu0 0.0
    %837 = vmatpush1.msra.mxu0 0.0
    %838 = vmatprep.subr.mxu0 0.0
    %839 = vmatpush1.msra.mxu0 0.0
    %840 = vmatprep.subr.mxu0 0.0
    %841 = vmatpush1.msra.mxu0 0.0
    %842 = vmatprep.subr.mxu0 0.0
    %843 = vmatpush1.msra.mxu0 0.0
    %844 = vmatprep.subr.mxu0 0.0
    %845 = vmatpush1.msra.mxu0 0.0
    %846 = vmatprep.subr.mxu0 0.0
    %847 = vmatpush1.msra.mxu0 0.0
    %848 = vmatprep.subr.mxu0 0.0
    %849 = vmatpush1.msra.mxu0 0.0
    %850 = vmatprep.subr.mxu0 0.0
    %851 = vmatpush1.msra.mxu0 0.0
    %852 = vmatprep.subr.mxu0 0.0
    %853 = vmatpush1.msra.mxu0 0.0
    %854 = vmatprep.subr.mxu0 0.0
    %855 = vmatpush1.msra.mxu0 0.0
    %856 = vmatprep.subr.mxu0 0.0
    %857 = vmatpush1.msra.mxu0 0.0
    %858 = vmatprep.subr.mxu0 0.0
    %859 = vmatpush1.msra.mxu0 0.0
    %860 = vmatprep.mubr.f32.mxu0 0.0
    %861 = vmatmul.mubr.f32.gmra.mrb[0].mxu0 %v794
    %v862 = vpop.f32.mrb[0].mxu0
    %v863 = vadd.f32 0.0, %v862
    %v864 = vpop.f32.mrb[0].mxu0
    %865 = vdwg.mxu0
    %v866 = vsub.f32 %v704, %v775
    %v867 = vadd.f32 %v866, %v863
    %v869 = vsel %vm48, %v867, 0
    %871 = vmatprep.subr.mxu0 0.0
    %872 = vmatpush1.msra.mxu0 %v38
    %873 = vmatprep.subr.mxu0 0.0
    %874 = vmatpush1.msra.mxu0 %v39
    %875 = vmatprep.subr.mxu0 0.0
    %876 = vmatpush1.msra.mxu0 %v40
    %877 = vmatprep.subr.mxu0 0.0
    %878 = vmatpush1.msra.mxu0 %v41
    %879 = vmatprep.subr.mxu0 0.0
    %880 = vmatpush1.msra.mxu0 %v54
    %881 = vmatprep.subr.mxu0 0.0
    %882 = vmatpush1.msra.mxu0 0.0
    %883 = vmatprep.subr.mxu0 0.0
    %884 = vmatpush1.msra.mxu0 0.0
    %885 = vmatprep.subr.mxu0 0.0
    %886 = vmatpush1.msra.mxu0 0.0
    %887 = vmatprep.subr.mxu0 0.0
    %888 = vmatpush1.msra.mxu0 0.0
    %889 = vmatprep.subr.mxu0 0.0
    %890 = vmatpush1.msra.mxu0 0.0
    %891 = vmatprep.subr.mxu0 0.0
    %892 = vmatpush1.msra.mxu0 0.0
    %893 = vmatprep.subr.mxu0 0.0
    %894 = vmatpush1.msra.mxu0 0.0
    %895 = vmatprep.subr.mxu0 0.0
    %896 = vmatpush1.msra.mxu0 0.0
    %897 = vmatprep.subr.mxu0 0.0
    %898 = vmatpush1.msra.mxu0 0.0
    %899 = vmatprep.subr.mxu0 0.0
    %900 = vmatpush1.msra.mxu0 0.0
    %901 = vmatprep.subr.mxu0 0.0
    %902 = vmatpush1.msra.mxu0 0.0
    %903 = vmatprep.subr.mxu0 0.0
    %904 = vmatpush1.msra.mxu0 0.0
    %905 = vmatprep.subr.mxu0 0.0
    %906 = vmatpush1.msra.mxu0 0.0
    %907 = vmatprep.subr.mxu0 0.0
    %908 = vmatpush1.msra.mxu0 0.0
    %909 = vmatprep.subr.mxu0 0.0
    %910 = vmatpush1.msra.mxu0 0.0
    %911 = vmatprep.subr.mxu0 0.0
    %912 = vmatpush1.msra.mxu0 0.0
    %913 = vmatprep.subr.mxu0 0.0
    %914 = vmatpush1.msra.mxu0 0.0
    %915 = vmatprep.subr.mxu0 0.0
    %916 = vmatpush1.msra.mxu0 0.0
    %917 = vmatprep.subr.mxu0 0.0
    %918 = vmatpush1.msra.mxu0 0.0
    %919 = vmatprep.subr.mxu0 0.0
    %920 = vmatpush1.msra.mxu0 0.0
    %921 = vmatprep.subr.mxu0 0.0
    %922 = vmatpush1.msra.mxu0 0.0
    %923 = vmatprep.subr.mxu0 0.0
    %924 = vmatpush1.msra.mxu0 0.0
    %925 = vmatprep.subr.mxu0 0.0
    %926 = vmatpush1.msra.mxu0 0.0
    %927 = vmatprep.subr.mxu0 0.0
    %928 = vmatpush1.msra.mxu0 0.0
    %929 = vmatprep.subr.mxu0 0.0
    %930 = vmatpush1.msra.mxu0 0.0
    %931 = vmatprep.subr.mxu0 0.0
    %932 = vmatpush1.msra.mxu0 0.0
    %933 = vmatprep.subr.mxu0 0.0
    %934 = vmatpush1.msra.mxu0 0.0
    %935 = vmatprep.mubr.f32.mxu0 0.0
    %936 = vmatmul.mubr.f32.gmra.mrb[0].mxu0 %v869
    %v937 = vpop.f32.mrb[0].mxu0
    %v938 = vadd.f32 0.0, %v937
    %v939 = vpop.f32.mrb[0].mxu0
    %940 = vdwg.mxu0
    %v941 = vsub.f32 %v938, %v44
    %v942 = vmax.f32 %v941, 0.0
    %v943 = vmul.f32 %v938, %v938
    %v944 = vadd.f32 %v943, 0.04
    %v945 = vmax.f32 %v944, 1e-08
    %v946 = vrsqrt.pop %v945
    %v947 = vmul.f32 %v945, %v946
    %vm948 = vcmp.eq.f32.partialorder %v945, inf
    %v949 = vsel %vm948, %v945, %v947
    %vm950 = vcmp.eq.f32.partialorder %v945, 0.0
    %v951 = vand.u32 %v945, 2147483648
    %v952 = vsel %vm950, %v951, %v949
    %v953 = vsub.f32 %v938, %v952
    %v954 = vmul.f32 %v953, 0.5
    %v955 = vsel %vm47, %v942, %v954
    %v957 = vsel %vm48, %v955, 0
    %959 = vmatprep.subr.mxu0 0.0
    %960 = vmatpush1.msra.mxu0 %v38
    %961 = vmatprep.subr.mxu0 0.0
    %962 = vmatpush1.msra.mxu0 %v39
    %963 = vmatprep.subr.mxu0 0.0
    %964 = vmatpush1.msra.mxu0 %v40
    %965 = vmatprep.subr.mxu0 0.0
    %966 = vmatpush1.msra.mxu0 %v41
    %967 = vmatprep.subr.mxu0 0.0
    %968 = vmatpush1.msra.mxu0 %v54
    %969 = vmatprep.subr.mxu0 0.0
    %970 = vmatpush1.msra.mxu0 0.0
    %971 = vmatprep.subr.mxu0 0.0
    %972 = vmatpush1.msra.mxu0 0.0
    %973 = vmatprep.subr.mxu0 0.0
    %974 = vmatpush1.msra.mxu0 0.0
    %975 = vmatprep.subr.mxu0 0.0
    %976 = vmatpush1.msra.mxu0 0.0
    %977 = vmatprep.subr.mxu0 0.0
    %978 = vmatpush1.msra.mxu0 0.0
    %979 = vmatprep.subr.mxu0 0.0
    %980 = vmatpush1.msra.mxu0 0.0
    %981 = vmatprep.subr.mxu0 0.0
    %982 = vmatpush1.msra.mxu0 0.0
    %983 = vmatprep.subr.mxu0 0.0
    %984 = vmatpush1.msra.mxu0 0.0
    %985 = vmatprep.subr.mxu0 0.0
    %986 = vmatpush1.msra.mxu0 0.0
    %987 = vmatprep.subr.mxu0 0.0
    %988 = vmatpush1.msra.mxu0 0.0
    %989 = vmatprep.subr.mxu0 0.0
    %990 = vmatpush1.msra.mxu0 0.0
    %991 = vmatprep.subr.mxu0 0.0
    %992 = vmatpush1.msra.mxu0 0.0
    %993 = vmatprep.subr.mxu0 0.0
    %994 = vmatpush1.msra.mxu0 0.0
    %995 = vmatprep.subr.mxu0 0.0
    %996 = vmatpush1.msra.mxu0 0.0
    %997 = vmatprep.subr.mxu0 0.0
    %998 = vmatpush1.msra.mxu0 0.0
    %999 = vmatprep.subr.mxu0 0.0
    %1000 = vmatpush1.msra.mxu0 0.0
    %1001 = vmatprep.subr.mxu0 0.0
    %1002 = vmatpush1.msra.mxu0 0.0
    %1003 = vmatprep.subr.mxu0 0.0
    %1004 = vmatpush1.msra.mxu0 0.0
    %1005 = vmatprep.subr.mxu0 0.0
    %1006 = vmatpush1.msra.mxu0 0.0
    %1007 = vmatprep.subr.mxu0 0.0
    %1008 = vmatpush1.msra.mxu0 0.0
    %1009 = vmatprep.subr.mxu0 0.0
    %1010 = vmatpush1.msra.mxu0 0.0
    %1011 = vmatprep.subr.mxu0 0.0
    %1012 = vmatpush1.msra.mxu0 0.0
    %1013 = vmatprep.subr.mxu0 0.0
    %1014 = vmatpush1.msra.mxu0 0.0
    %1015 = vmatprep.subr.mxu0 0.0
    %1016 = vmatpush1.msra.mxu0 0.0
    %1017 = vmatprep.subr.mxu0 0.0
    %1018 = vmatpush1.msra.mxu0 0.0
    %1019 = vmatprep.subr.mxu0 0.0
    %1020 = vmatpush1.msra.mxu0 0.0
    %1021 = vmatprep.subr.mxu0 0.0
    %1022 = vmatpush1.msra.mxu0 0.0
    %1023 = vmatprep.mubr.f32.mxu0 0.0
    %1024 = vmatmul.mubr.f32.gmra.mrb[0].mxu0 %v957
    %v1025 = vpop.f32.mrb[0].mxu0
    %v1026 = vadd.f32 0.0, %v1025
    %v1027 = vpop.f32.mrb[0].mxu0
    %1028 = vdwg.mxu0
    %v1029 = vsub.f32 %v867, %v938
    %v1030 = vadd.f32 %v1029, %v1026
    %1031 = vrot.lane.b32.xlu0 %v378, 28
    %v1032 = vpop.permute.xlu0 %1031
    %1034 = vrot.lane.b32.xlu0 %v541, 56
    %v1035 = vpop.permute.xlu0 %1034
    %1037 = vrot.lane.b32.xlu0 %v704, 84
    %v1038 = vpop.permute.xlu0 %1037
    %1040 = vrot.lane.b32.xlu0 %v867, 112
    %v1041 = vpop.permute.xlu0 %1040
    %1044 = vrot.lane.b32.xlu0 %v1030, 12
    %v1045 = vpop.permute.xlu0 %1044
    %vm1047 = vcmask 228352
    %v1048 = vsel %vm1047, %v215, %v1032
    %vm1049 = vcmask 457728
    %v1050 = vsel %vm1049, %v1048, %v1035
    %vm1051 = vcmask 687104
    %v1052 = vsel %vm1051, %v1050, %v1038
    %vm1053 = vcmask 916480
    %v1054 = vsel %vm1053, %v1052, %v1041
    %vm1055 = vcmask 97280
    %v1056 = vsel %vm1055, %v1041, %v1045
    %v1059 = vcombine.low %v1054, %v1056
    %vm1061 = vcmask 326660
    %vm1062 = vmor %vm1061, %vm52
    %1063 = vst.msk [vmem:[#allocation7] sm:$0xff] %vm1062, %v1059
    // Predicated region
    $region18: #{tpu_custom_call.1} parent=1 // pred_check
      _
    $region19: #{tpu_custom_call.1} parent=1 // pred_check_branch
      %1065 = sbr.rel (0) target = $region21
    $region20: #{tpu_custom_call.1} parent=1 // pred_region
      %s1067 = ssub.s32 128, 128
      %1068 = vsyncadd [#allocation4], %s1067
      %s1070 = sshll.u32 [#allocation7], 4
      %s1071 = int_to_ptr.vmem [resolvable:$true] %s1070
      %1073 = dma.vmem_to_hbm [thread:$0]  %s1071, 128, %s2, [#allocation4]
    $region21: #{tpu_custom_call.1} parent=1 // pred_fallthru
      _
    // Predicated region
    $region22: #{tpu_custom_call.1} parent=1 // pred_check
      _
    $region23: #{tpu_custom_call.1} parent=1 // pred_check_branch
      %1075 = sbr.rel (0) target = $region25
    $region24: #{tpu_custom_call.1} parent=1 // pred_region
      %1076 = dma.done [#allocation4], 128
    $region25: #{tpu_custom_call.1} parent=1 // pred_fallthru
      _
    %1077 = vsyncpa [#allocation3], 1
    %1078 = vsyncpa [#allocation6], 1
    %1079 = vsyncpa [#allocation4], 1

</llo_original>
